<compile_context>
chip_gen: v5e
topology: v5e:2x2
jax: 0.10.0
libtpu: 0.0.40
codegen_flags: <defaults>
</compile_context>

<pallas_src>
import numpy as np
import jax
import jax.numpy as jnp
from jax.experimental import pallas as pl
from jax.experimental.pallas import tpu as pltpu

LANE = 128


def _round_up(a, b):
    return (a + b - 1) // b * b


# ----------------------------------------------------------------------------
# Fused kernel: (folded body matmul) + ReLU + Linear + ReLU + Linear
# One batch tile per grid step; weights are VMEM-resident across steps.
# ----------------------------------------------------------------------------
def part_model_kernel(x_ref, wb_ref, bb_ref, w1_ref, b1_ref, w2_ref, b2_ref, o_ref):
    # x_ref  : (TN, Cin*H*W)  bf16  NCHW-flattened input tile
    # wb_ref : (Cin*H*W, F)   bf16  folded zero-pad+conv3x3+BN(eval)+AvgPool4+flatten
    # bb_ref : (1, F)         f32   folded body bias
    # w1_ref : (F, HID)       bf16 ; b1_ref : (1, HID) f32
    # w2_ref : (HID, CP)      bf16  (classes zero-padded to CP=128) ; b2_ref : (1, CP) f32
    # o_ref  : (TN, CP)       f32   lane-dense padded logits
    feats = jnp.dot(x_ref[...], wb_ref[...],
                    preferred_element_type=jnp.float32) + bb_ref[...]
    h = jnp.maximum(feats, 0.0).astype(jnp.bfloat16)                  # main: ReLU
    h = jnp.dot(h, w1_ref[...],
                preferred_element_type=jnp.float32) + b1_ref[...]     # Linear(F, HID)
    h = jnp.maximum(h, 0.0).astype(jnp.bfloat16)                      # ReLU
    o_ref[...] = jnp.dot(h, w2_ref[...],
                         preferred_element_type=jnp.float32) + b2_ref[...]  # Linear(HID, C)


# ----------------------------------------------------------------------------
# Wrapper
# ----------------------------------------------------------------------------
def part_model_forward(x_nchw, w_body, b_body, w1, b1, w2p, b2p, *,
                       num_classes, tn=16):
    n, cin, h, w = x_nchw.shape
    k_in = cin * h * w
    f = w_body.shape[1]
    hid = w1.shape[1]
    cp = w2p.shape[1]

    # XLA-side glue: NCHW flatten is a free reshape; bf16 cast halves input DMA bytes.
    x = x_nchw.reshape(n, k_in).astype(jnp.bfloat16)

    # Batch tile: multiple of 16 (bf16 sublane packing).  At real batch sizes pick
    # tn >= 256 to amortize per-step overhead and fill the MXU M dimension.
    tn = max(16, min(tn, _round_up(n, 16)))
    n_pad = _round_up(n, tn)
    if n_pad != n:
        x = jnp.pad(x, ((0, n_pad - n), (0, 0)))
    grid = (n_pad // tn,)

    flops = 2 * n_pad * (k_in * f + f * hid + hid * cp)
    bytes_accessed = (x.size * 2 + w_body.size * 2 + w1.size * 2 + w2p.size * 2
                      + (b_body.size + b1.size + b2p.size) * 4 + n_pad * cp * 4)

    out = pl.pallas_call(
        part_model_kernel,
        out_shape=jax.ShapeDtypeStruct((n_pad, cp), jnp.float32),
        grid_spec=pltpu.PrefetchScalarGridSpec(
            num_scalar_prefetch=0,
            grid=grid,
            in_specs=[
                pl.BlockSpec((tn, k_in), lambda i: (i, 0)),   # input tile (per step)
                pl.BlockSpec((k_in, f), lambda i: (0, 0)),    # W_body (resident)
                pl.BlockSpec((1, f), lambda i: (0, 0)),       # b_body
                pl.BlockSpec((f, hid), lambda i: (0, 0)),     # W1
                pl.BlockSpec((1, hid), lambda i: (0, 0)),     # b1
                pl.BlockSpec((hid, cp), lambda i: (0, 0)),    # W2 (padded)
                pl.BlockSpec((1, cp), lambda i: (0, 0)),      # b2 (padded)
            ],
            out_specs=pl.BlockSpec((tn, cp), lambda i: (i, 0)),
        ),
        compiler_params=pltpu.CompilerParams(
            dimension_semantics=("parallel",),
            vmem_limit_bytes=32 * 1024 * 1024,   # per-step working set is ~1 MB here;
                                                 # re-budget if the model is scaled up
        ),
        cost_estimate=pl.CostEstimate(flops=flops, transcendentals=0,
                                      bytes_accessed=bytes_accessed),
    )(x, w_body, b_body, w1, b1, w2p, b2p)

    return out[:n, :num_classes]


class PartModel:
    """forward(X): X = body(X) (frozen feature extractor); return main(X)."""

    def __init__(self, body_params, main_params, num_classes, batch_tile=16):
        self.w_body, self.b_body = body_params            # folded body affine map
        self.w1, self.b1, self.w2p, self.b2p = main_params  # trainable head
        self.num_classes = num_classes
        self.batch_tile = batch_tile

    def __call__(self, x_nchw):
        return part_model_forward(x_nchw, self.w_body, self.b_body,
                                  self.w1, self.b1, self.w2p, self.b2p,
                                  num_classes=self.num_classes, tn=self.batch_tile)


# ----------------------------------------------------------------------------
# Offline weight preparation (pure JAX, done once)
# ----------------------------------------------------------------------------
def body_reference(x_nchw, conv_w_hwio, scale, bias, pool=4):
    """Conv2d(3x3, pad=1) -> eval-BatchNorm affine (conv bias folded into `bias`) ->
    AvgPool2d(pool) -> flatten in PyTorch (C, Hp, Wp) order.  f32, HIGHEST precision."""
    hi = jax.lax.Precision.HIGHEST
    x = jnp.transpose(x_nchw, (0, 2, 3, 1))
    y = jax.lax.conv_general_dilated(
        x, conv_w_hwio, window_strides=(1, 1), padding=((1, 1), (1, 1)),
        dimension_numbers=("NHWC", "HWIO", "NHWC"), precision=hi)
    y = y * scale.reshape(1, 1, 1, -1) + bias.reshape(1, 1, 1, -1)
    n, h, w, c = y.shape
    y = y.reshape(n, h // pool, pool, w // pool, pool, c).mean(axis=(2, 4))
    return jnp.transpose(y, (0, 3, 1, 2)).reshape(n, -1)       # (N, C*Hp*Wp)


def linearize_body(cin, h, w, conv_w_hwio, scale, bias):
    """The frozen body is affine in x, so express it exactly as
    body(x) = x.reshape(N, Cin*H*W) @ W_body + b_body   (NCHW flatten order)."""
    k_in = cin * h * w
    basis = jnp.eye(k_in, dtype=jnp.float32).reshape(k_in, cin, h, w)
    zero = jnp.zeros((1, cin, h, w), jnp.float32)
    b_body = body_reference(zero, conv_w_hwio, scale, bias)            # (1, F)
    w_body = body_reference(basis, conv_w_hwio, scale, bias) - b_body  # (Cin*H*W, F)
    return w_body, b_body


# ----------------------------------------------------------------------------
# Demo / self-check
# ----------------------------------------------------------------------------
if __name__ == "__main__":
    # Small shapes: batch 32 (matches the script's train batch_size), channels 4,
    # spatial 16x16, conv width d=8, hidden 32, classes 10.  F = 8*4*4 = 128.
    N, CIN, H, W = 32, 4, 16, 16
    D, HID, CLASSES = 8, 32, 10
    HP, WP = H // 4, W // 4
    F = D * HP * WP                      # 128 -> lane-dense feature slab
    TN = 16                              # batch tile -> grid=(2,), both v7x cores busy

    key = jax.random.PRNGKey(0)
    ks = jax.random.split(key, 12)

    # Conv2d(CIN, D, 3, padding=1) in HWIO + BatchNorm2d(D) (eval) fused affine.
    conv_w = jax.random.normal(ks[0], (3, 3, CIN, D), jnp.float32) * 0.1
    conv_b = jax.random.normal(ks[1], (D,), jnp.float32) * 0.1
    gamma = 1.0 + jax.random.normal(ks[2], (D,), jnp.float32) * 0.1
    beta = jax.random.normal(ks[3], (D,), jnp.float32) * 0.1
    run_mean = jax.random.normal(ks[4], (D,), jnp.float32) * 0.1
    run_var = jax.random.uniform(ks[5], (D,), jnp.float32, 0.5, 1.5)
    eps = 1e-5
    bn_scale = gamma / jnp.sqrt(run_var + eps)
    fused_scale = bn_scale                                    # per-channel BN scale
    fused_bias = (conv_b - run_mean) * bn_scale + beta        # conv bias folded in

    # Head: Linear(F, HID), Linear(HID, CLASSES) stored as x @ W + b.
    w1 = jax.random.normal(ks[6], (F, HID), jnp.float32) * (1.0 / np.sqrt(F))
    b1 = jax.random.normal(ks[7], (1, HID), jnp.float32) * 0.1
    w2 = jax.random.normal(ks[8], (HID, CLASSES), jnp.float32) * (1.0 / np.sqrt(HID))
    b2 = jax.random.normal(ks[9], (1, CLASSES), jnp.float32) * 0.1

    # ---- offline prep: fold pad+conv+BN+pool+flatten into one matrix; pad classes ----
    w_body, b_body = linearize_body(CIN, H, W, conv_w, fused_scale, fused_bias)
    CP = _round_up(CLASSES, LANE)                             # 10 -> 128 (lane-dense out)
    w2p = jnp.zeros((HID, CP), jnp.float32).at[:, :CLASSES].set(w2)
    b2p = jnp.zeros((1, CP), jnp.float32).at[:, :CLASSES].set(b2)

    model = PartModel(
        body_params=(w_body.astype(jnp.bfloat16), b_body),
        main_params=(w1.astype(jnp.bfloat16), b1,
                     w2p.astype(jnp.bfloat16), b2p),
        num_classes=CLASSES, batch_tile=TN)

    x = jax.random.normal(ks[10], (N, CIN, H, W), jnp.float32)    # NCHW like torch
    logits = model(x)
    jax.block_until_ready(logits)
    assert logits.shape == (N, CLASSES) and logits.dtype == jnp.float32

    # Pure-JAX f32 reference with the original (unfused) op sequence.
    feats = body_reference(x, conv_w, fused_scale, fused_bias)
    hi = jax.lax.Precision.HIGHEST
    h1 = jnp.dot(jnp.maximum(feats, 0.0), w1, precision=hi) + b1
    ref = jnp.dot(jnp.maximum(h1, 0.0), w2, precision=hi) + b2
    err = float(jnp.max(jnp.abs(logits - ref)))
    assert err < 5e-2, f"kernel vs reference max |err| = {err}"
    print("KERNEL_OK")
</pallas_src>

<mosaic_0001>
module attributes {stable_mosaic.version = 11 : i64} {
  func.func @part_model_kernel(%arg0: i32, %arg1: memref<16x1024xbf16, #tpu.memory_space<vmem>>, %arg2: memref<1024x128xbf16, #tpu.memory_space<vmem>>, %arg3: memref<1x128xf32, #tpu.memory_space<vmem>>, %arg4: memref<128x32xbf16, #tpu.memory_space<vmem>>, %arg5: memref<1x32xf32, #tpu.memory_space<vmem>>, %arg6: memref<32x128xbf16, #tpu.memory_space<vmem>>, %arg7: memref<1x128xf32, #tpu.memory_space<vmem>>, %arg8: memref<16x128xf32, #tpu.memory_space<vmem>>) attributes {dimension_semantics = [#tpu.dimension_semantics<parallel>], iteration_bounds = array<i64: 2>, scalar_prefetch = 0 : i64, scratch_operands = 0 : i64, tpu.core_type = #tpu.core_type<tc>, window_params = [{transform_indices = @transform_0, window_bounds = array<i64: 16, 1024>}, {pipeline_mode = #tpu.pipeline_mode<synchronous>, transform_indices = @transform_1, window_bounds = array<i64: 1024, 128>}, {pipeline_mode = #tpu.pipeline_mode<synchronous>, transform_indices = @transform_2, window_bounds = array<i64: 1, 128>}, {pipeline_mode = #tpu.pipeline_mode<synchronous>, transform_indices = @transform_3, window_bounds = array<i64: 128, 32>}, {pipeline_mode = #tpu.pipeline_mode<synchronous>, transform_indices = @transform_4, window_bounds = array<i64: 1, 32>}, {pipeline_mode = #tpu.pipeline_mode<synchronous>, transform_indices = @transform_5, window_bounds = array<i64: 32, 128>}, {pipeline_mode = #tpu.pipeline_mode<synchronous>, transform_indices = @transform_6, window_bounds = array<i64: 1, 128>}, {transform_indices = @transform_7, window_bounds = array<i64: 16, 128>}]} {
    %c0 = arith.constant 0 : index
    %c0_0 = arith.constant 0 : index
    %0 = vector.load %arg1[%c0, %c0_0] : memref<16x1024xbf16, #tpu.memory_space<vmem>>, vector<16x1024xbf16>
    %c0_1 = arith.constant 0 : index
    %c0_2 = arith.constant 0 : index
    %1 = vector.load %arg2[%c0_1, %c0_2] : memref<1024x128xbf16, #tpu.memory_space<vmem>>, vector<1024x128xbf16>
    %cst = arith.constant dense<0.000000e+00> : vector<16x128xf32>
    %2 = tpu.matmul %0, %1, %cst {dimension_numbers = #tpu.dot_dimension_numbers<[1], [0], [0], [1], [0, 0, 1, 1], [], []>} : vector<16x1024xbf16>, vector<1024x128xbf16>, vector<16x128xf32> -> vector<16x128xf32>
    %c0_3 = arith.constant 0 : index
    %c0_4 = arith.constant 0 : index
    %3 = vector.load %arg3[%c0_3, %c0_4] : memref<1x128xf32, #tpu.memory_space<vmem>>, vector<1x128xf32>
    %4 = vector.broadcast %3 : vector<1x128xf32> to vector<16x128xf32>
    %5 = arith.addf %2, %4 : vector<16x128xf32>
    %cst_5 = arith.constant 0.000000e+00 : f32
    %6 = vector.broadcast %cst_5 : f32 to vector<16x128xf32>
    %7 = arith.maximumf %5, %6 : vector<16x128xf32>
    %8 = arith.truncf %7 : vector<16x128xf32> to vector<16x128xbf16>
    %c0_6 = arith.constant 0 : index
    %c0_7 = arith.constant 0 : index
    %9 = vector.load %arg4[%c0_6, %c0_7] : memref<128x32xbf16, #tpu.memory_space<vmem>>, vector<128x32xbf16>
    %cst_8 = arith.constant dense<0.000000e+00> : vector<16x32xf32>
    %10 = tpu.matmul %8, %9, %cst_8 {dimension_numbers = #tpu.dot_dimension_numbers<[1], [0], [0], [1], [0, 0, 1, 1], [], []>} : vector<16x128xbf16>, vector<128x32xbf16>, vector<16x32xf32> -> vector<16x32xf32>
    %c0_9 = arith.constant 0 : index
    %c0_10 = arith.constant 0 : index
    %11 = vector.load %arg5[%c0_9, %c0_10] : memref<1x32xf32, #tpu.memory_space<vmem>>, vector<1x32xf32>
    %12 = vector.broadcast %11 : vector<1x32xf32> to vector<16x32xf32>
    %13 = arith.addf %10, %12 : vector<16x32xf32>
    %cst_11 = arith.constant 0.000000e+00 : f32
    %14 = vector.broadcast %cst_11 : f32 to vector<16x32xf32>
    %15 = arith.maximumf %13, %14 : vector<16x32xf32>
    %16 = arith.truncf %15 : vector<16x32xf32> to vector<16x32xbf16>
    %c0_12 = arith.constant 0 : index
    %c0_13 = arith.constant 0 : index
    %17 = vector.load %arg6[%c0_12, %c0_13] : memref<32x128xbf16, #tpu.memory_space<vmem>>, vector<32x128xbf16>
    %cst_14 = arith.constant dense<0.000000e+00> : vector<16x128xf32>
    %18 = tpu.matmul %16, %17, %cst_14 {dimension_numbers = #tpu.dot_dimension_numbers<[1], [0], [0], [1], [0, 0, 1, 1], [], []>} : vector<16x32xbf16>, vector<32x128xbf16>, vector<16x128xf32> -> vector<16x128xf32>
    %c0_15 = arith.constant 0 : index
    %c0_16 = arith.constant 0 : index
    %19 = vector.load %arg7[%c0_15, %c0_16] : memref<1x128xf32, #tpu.memory_space<vmem>>, vector<1x128xf32>
    %20 = vector.broadcast %19 : vector<1x128xf32> to vector<16x128xf32>
    %21 = arith.addf %18, %20 : vector<16x128xf32>
    %c0_17 = arith.constant 0 : index
    %c0_18 = arith.constant 0 : index
    %22 = vector.load %arg8[%c0_17, %c0_18] : memref<16x128xf32, #tpu.memory_space<vmem>>, vector<16x128xf32>
    tpu.vector_store %arg8[%c0_17, %c0_18], %21 {strides = array<i32>} : memref<16x128xf32, #tpu.memory_space<vmem>>, vector<16x128xf32>,
    return
  }
  func.func @transform_0(%arg0: i32) -> (i32, i32) {
    %c0_i32 = arith.constant 0 : i32
    %c0_i32_0 = arith.constant 0 : i32
    return %arg0, %c0_i32 : i32, i32
  }
  func.func @transform_1(%arg0: i32) -> (i32, i32) {
    %c0_i32 = arith.constant 0 : i32
    %c0_i32_0 = arith.constant 0 : i32
    %c0_i32_1 = arith.constant 0 : i32
    return %c0_i32, %c0_i32_0 : i32, i32
  }
  func.func @transform_2(%arg0: i32) -> (i32, i32) {
    %c0_i32 = arith.constant 0 : i32
    %c0_i32_0 = arith.constant 0 : i32
    %c0_i32_1 = arith.constant 0 : i32
    return %c0_i32, %c0_i32_0 : i32, i32
  }
  func.func @transform_3(%arg0: i32) -> (i32, i32) {
    %c0_i32 = arith.constant 0 : i32
    %c0_i32_0 = arith.constant 0 : i32
    %c0_i32_1 = arith.constant 0 : i32
    return %c0_i32, %c0_i32_0 : i32, i32
  }
  func.func @transform_4(%arg0: i32) -> (i32, i32) {
    %c0_i32 = arith.constant 0 : i32
    %c0_i32_0 = arith.constant 0 : i32
    %c0_i32_1 = arith.constant 0 : i32
    return %c0_i32, %c0_i32_0 : i32, i32
  }
  func.func @transform_5(%arg0: i32) -> (i32, i32) {
    %c0_i32 = arith.constant 0 : i32
    %c0_i32_0 = arith.constant 0 : i32
    %c0_i32_1 = arith.constant 0 : i32
    return %c0_i32, %c0_i32_0 : i32, i32
  }
  func.func @transform_6(%arg0: i32) -> (i32, i32) {
    %c0_i32 = arith.constant 0 : i32
    %c0_i32_0 = arith.constant 0 : i32
    %c0_i32_1 = arith.constant 0 : i32
    return %c0_i32, %c0_i32_0 : i32, i32
  }
  func.func @transform_7(%arg0: i32) -> (i32, i32) {
    %c0_i32 = arith.constant 0 : i32
    %c0_i32_0 = arith.constant 0 : i32
    return %arg0, %c0_i32 : i32, i32
  }
}

</mosaic_0001>

<llo_original>
// kernel: tpu_custom_call.1
$region0: #{tpu_custom_call.1}
  #allocation0 [shape = 'u32[]', space=smem, size = 0x4, offset = 0x4, fixed_abs, tag = 'smem constant byte address 0x4 - core index']
  #allocation1 [shape = 'u32[72,128]{1,0:T(1,128)}', space=vmem, size = 0x9000, scoped, tag = 'internal scratch']
  %s0 = inlined_call_operand.hbm [shape: bf16[32,1024], index: 0, kind: input, shape index: {}]
  %s1 = inlined_call_operand.hbm [shape: bf16[1024,128], index: 1, kind: input, shape index: {}]
  %s2 = inlined_call_operand.vmem [shape: f32[1,128], index: 2, kind: input, shape index: {}]
  %s3 = inlined_call_operand.vmem [shape: bf16[128,32], index: 3, kind: input, shape index: {}]
  %s4 = inlined_call_operand.vmem [shape: f32[1,32], index: 4, kind: input, shape index: {}]
  %s5 = inlined_call_operand.vmem [shape: bf16[32,128], index: 5, kind: input, shape index: {}]
  %s6 = inlined_call_operand.vmem [shape: f32[1,128], index: 6, kind: input, shape index: {}]
  %s7 = inlined_call_operand.hbm [shape: f32[32,128], index: 7, kind: output, shape index: {}]
  %s8 = sld [smem:[#allocation0]]
  $region69: #{tpu_custom_call.1} parent=0
    _
  %s10 = ssub.s32 1, %s8
  %s11 = scalar_select 0, %s10, %s8
  $region1: #{tpu_custom_call.1} parent=0
    #allocation2 [shape = 'u8[65536]{0}', space=vmem, size = 0x10000, scoped, tag = 'input window, operand 0']
    #allocation3 [shape = 's32[2]{0}', space=sflag, size = 0x8, scoped, tag = 'scoped memory for tpu_custom_call.1']
    #allocation4 [shape = 's32[2]{0}', space=sflag, size = 0x8, scoped, tag = 'scoped memory for tpu_custom_call.1']
    #allocation5 [shape = 'u8[262144]{0}', space=vmem, size = 0x40000, scoped, tag = 'input window, operand 1, single buffered']
    #allocation6 [shape = 's32[1]{0}', space=sflag, size = 0x4, scoped, tag = 'scoped memory for tpu_custom_call.1']
    #allocation7 [shape = 'u8[16384]{0}', space=vmem, size = 0x4000, scoped, tag = 'output window, operand 0']
    %12 = vsyncpa [#allocation3], 0
    %s13 = scalar_lea.sflag [#allocation3], 1
    %14 = vsyncpa %s13, 0
    %15 = vsyncpa [#allocation6], 0
    %16 = vsyncpa [#allocation4], 0
    %s17 = scalar_lea.sflag [#allocation4], 1
    %18 = vsyncpa %s17, 0
    loop: start=0, step=1, limit=4
    $region2: #{tpu_custom_call.1} parent=1 // loop_pre_header
      _
    $region3: #{tpu_custom_call.1} parent=1 // loop_header
      %s20 = sphi 0, %s24
      %p21 = scmp.ge.s32.totalorder %s20, 4
      %s30 = sphi 0, %s32
      %s33 = sphi 0, %s30
      %s34 = sphi 0, %s33
      %s50 = sphi 0, %s34
      %s54 = sphi 0, %s54
      %s56 = sphi 0, %s54
      %s57 = sphi 0, %s56
      %s71 = sphi 0, %s57
      %s75 = sphi 0, %s75
      %s77 = sphi 0, %s75
      %s78 = sphi 0, %s77
      %s92 = sphi 0, %s78
      %s96 = sphi 0, %s96
      %s98 = sphi 0, %s96
      %s99 = sphi 0, %s98
      %s113 = sphi 0, %s99
      %s117 = sphi 0, %s117
      %s119 = sphi 0, %s117
      %s120 = sphi 0, %s119
      %s134 = sphi 0, %s120
      %s138 = sphi 0, %s138
      %s140 = sphi 0, %s138
      %s141 = sphi 0, %s140
      %s155 = sphi 0, %s141
      %s159 = sphi 0, %s159
      %s161 = sphi 0, %s159
      %s162 = sphi 0, %s161
      %s176 = sphi 0, %s162
      %s182 = sphi 0, %s184
      %s185 = sphi 0, %s182
      %s186 = sphi 0, %s185
      %s202 = sphi 0, %s186
    $region4: #{tpu_custom_call.1} parent=1 // loop_header_branch
      %23 = sbr.rel (%p21) target = $region8
    $region5: #{tpu_custom_call.1} parent=1 // loop_body
      %s25 = ssub.s32 %s20, 1
      %s26 = ssub.s32 %s20, 2
      %s27 = sadd.s32 %s20, 1
      %s28 = ssub.s32 %s20, %s27
      %p29 = scmp.eq.s32.totalorder %s28, 0
      %s31 = sadd.s32 %s30, 1
      %s32 = scalar_select %p29, %s30, %s31
      %p35 = pneg %p29
      %p36 = scmp.eq.s32.totalorder %s20, 1
      %p37 = por %p35, %p36
      %p38 = scmp.ne.s32.totalorder %s30, %s33
      %p39 = scmp.eq.s32.totalorder %s20, 0
      %p40 = por %p38, %p39
      %p41 = scmp.ne.s32.totalorder %s30, %s33
      %p42 = scmp.eq.s32.totalorder %s25, 1
      %p43 = por %p41, %p42
      %p44 = scmp.ne.s32.totalorder %s33, %s34
      %p45 = scmp.eq.s32.totalorder %s25, 0
      %p46 = por %p44, %p45
      %p47 = scmp.ne.s32.totalorder %s33, %s34
      %p48 = scmp.eq.s32.totalorder %s26, 1
      %p49 = por %p47, %p48
      %p51 = scmp.ne.s32.totalorder %s34, %s50
      %p52 = scmp.eq.s32.totalorder %s26, 0
      %p53 = por %p51, %p52
      %s55 = sadd.s32 %s54, 1
      %p58 = scmp.eq.s32.totalorder %s20, 1
      %p59 = scmp.ne.s32.totalorder %s54, %s56
      %p60 = scmp.eq.s32.totalorder %s20, 0
      %p61 = por %p59, %p60
      %p62 = scmp.ne.s32.totalorder %s54, %s56
      %p63 = scmp.eq.s32.totalorder %s25, 1
      %p64 = por %p62, %p63
      %p65 = scmp.ne.s32.totalorder %s56, %s57
      %p66 = scmp.eq.s32.totalorder %s25, 0
      %p67 = por %p65, %p66
      %p68 = scmp.ne.s32.totalorder %s56, %s57
      %p69 = scmp.eq.s32.totalorder %s26, 1
      %p70 = por %p68, %p69
      %p72 = scmp.ne.s32.totalorder %s57, %s71
      %p73 = scmp.eq.s32.totalorder %s26, 0
      %p74 = por %p72, %p73
      %s76 = sadd.s32 %s75, 1
      %p79 = scmp.eq.s32.totalorder %s20, 1
      %p80 = scmp.ne.s32.totalorder %s75, %s77
      %p81 = scmp.eq.s32.totalorder %s20, 0
      %p82 = por %p80, %p81
      %p83 = scmp.ne.s32.totalorder %s75, %s77
      %p84 = scmp.eq.s32.totalorder %s25, 1
      %p85 = por %p83, %p84
      %p86 = scmp.ne.s32.totalorder %s77, %s78
      %p87 = scmp.eq.s32.totalorder %s25, 0
      %p88 = por %p86, %p87
      %p89 = scmp.ne.s32.totalorder %s77, %s78
      %p90 = scmp.eq.s32.totalorder %s26, 1
      %p91 = por %p89, %p90
      %p93 = scmp.ne.s32.totalorder %s78, %s92
      %p94 = scmp.eq.s32.totalorder %s26, 0
      %p95 = por %p93, %p94
      %s97 = sadd.s32 %s96, 1
      %p100 = scmp.eq.s32.totalorder %s20, 1
      %p101 = scmp.ne.s32.totalorder %s96, %s98
      %p102 = scmp.eq.s32.totalorder %s20, 0
      %p103 = por %p101, %p102
      %p104 = scmp.ne.s32.totalorder %s96, %s98
      %p105 = scmp.eq.s32.totalorder %s25, 1
      %p106 = por %p104, %p105
      %p107 = scmp.ne.s32.totalorder %s98, %s99
      %p108 = scmp.eq.s32.totalorder %s25, 0
      %p109 = por %p107, %p108
      %p110 = scmp.ne.s32.totalorder %s98, %s99
      %p111 = scmp.eq.s32.totalorder %s26, 1
      %p112 = por %p110, %p111
      %p114 = scmp.ne.s32.totalorder %s99, %s113
      %p115 = scmp.eq.s32.totalorder %s26, 0
      %p116 = por %p114, %p115
      %s118 = sadd.s32 %s117, 1
      %p121 = scmp.eq.s32.totalorder %s20, 1
      %p122 = scmp.ne.s32.totalorder %s117, %s119
      %p123 = scmp.eq.s32.totalorder %s20, 0
      %p124 = por %p122, %p123
      %p125 = scmp.ne.s32.totalorder %s117, %s119
      %p126 = scmp.eq.s32.totalorder %s25, 1
      %p127 = por %p125, %p126
      %p128 = scmp.ne.s32.totalorder %s119, %s120
      %p129 = scmp.eq.s32.totalorder %s25, 0
      %p130 = por %p128, %p129
      %p131 = scmp.ne.s32.totalorder %s119, %s120
      %p132 = scmp.eq.s32.totalorder %s26, 1
      %p133 = por %p131, %p132
      %p135 = scmp.ne.s32.totalorder %s120, %s134
      %p136 = scmp.eq.s32.totalorder %s26, 0
      %p137 = por %p135, %p136
      %s139 = sadd.s32 %s138, 1
      %p142 = scmp.eq.s32.totalorder %s20, 1
      %p143 = scmp.ne.s32.totalorder %s138, %s140
      %p144 = scmp.eq.s32.totalorder %s20, 0
      %p145 = por %p143, %p144
      %p146 = scmp.ne.s32.totalorder %s138, %s140
      %p147 = scmp.eq.s32.totalorder %s25, 1
      %p148 = por %p146, %p147
      %p149 = scmp.ne.s32.totalorder %s140, %s141
      %p150 = scmp.eq.s32.totalorder %s25, 0
      %p151 = por %p149, %p150
      %p152 = scmp.ne.s32.totalorder %s140, %s141
      %p153 = scmp.eq.s32.totalorder %s26, 1
      %p154 = por %p152, %p153
      %p156 = scmp.ne.s32.totalorder %s141, %s155
      %p157 = scmp.eq.s32.totalorder %s26, 0
      %p158 = por %p156, %p157
      %s160 = sadd.s32 %s159, 1
      %p163 = scmp.eq.s32.totalorder %s20, 1
      %p164 = scmp.ne.s32.totalorder %s159, %s161
      %p165 = scmp.eq.s32.totalorder %s20, 0
      %p166 = por %p164, %p165
      %p167 = scmp.ne.s32.totalorder %s159, %s161
      %p168 = scmp.eq.s32.totalorder %s25, 1
      %p169 = por %p167, %p168
      %p170 = scmp.ne.s32.totalorder %s161, %s162
      %p171 = scmp.eq.s32.totalorder %s25, 0
      %p172 = por %p170, %p171
      %p173 = scmp.ne.s32.totalorder %s161, %s162
      %p174 = scmp.eq.s32.totalorder %s26, 1
      %p175 = por %p173, %p174
      %p177 = scmp.ne.s32.totalorder %s162, %s176
      %p178 = scmp.eq.s32.totalorder %s26, 0
      %p179 = por %p177, %p178
      %s180 = ssub.s32 %s20, %s27
      %p181 = scmp.eq.s32.totalorder %s180, 0
      %s183 = sadd.s32 %s182, 1
      %s184 = scalar_select %p181, %s182, %s183
      %p187 = pneg %p181
      %p188 = scmp.eq.s32.totalorder %s20, 1
      %p189 = por %p187, %p188
      %p190 = scmp.ne.s32.totalorder %s182, %s185
      %p191 = scmp.eq.s32.totalorder %s20, 0
      %p192 = por %p190, %p191
      %p193 = scmp.ne.s32.totalorder %s182, %s185
      %p194 = scmp.eq.s32.totalorder %s25, 1
      %p195 = por %p193, %p194
      %p196 = scmp.ne.s32.totalorder %s185, %s186
      %p197 = scmp.eq.s32.totalorder %s25, 0
      %p198 = por %p196, %p197
      %p199 = scmp.ne.s32.totalorder %s185, %s186
      %p200 = scmp.eq.s32.totalorder %s26, 1
      %p201 = por %p199, %p200
      %p203 = scmp.ne.s32.totalorder %s186, %s202
      %p204 = scmp.eq.s32.totalorder %s26, 0
      %p205 = por %p203, %p204
      %p206 = scmp.le.s32.totalorder 1, %s20
      %p207 = scmp.lt.s32.totalorder %s20, 3
      %p208 = pnand %p206, %p207
      %p209 = pneg %p208
      // Predicated region
      $region9: #{tpu_custom_call.1} parent=5 // pred_check
        _
      $region10: #{tpu_custom_call.1} parent=5 // pred_check_branch
        %211 = sbr.rel (%p208) target = $region12
      $region11: #{tpu_custom_call.1} parent=5 // pred_region
        %s212 = ssub.s32 %s20, 1
        // Predicated region
        $region13: #{tpu_custom_call.1} parent=11 // pred_check
          %p213 = pneg %p67
        $region14: #{tpu_custom_call.1} parent=11 // pred_check_branch
          %215 = sbr.rel (%p213) target = $region16
        $region15: #{tpu_custom_call.1} parent=11 // pred_region
          %217 = vsyncadd [#allocation6], 0
          %s218 = sshll.u32 %s1, 4
          %s219 = int_to_ptr.hbm [resolvable:$true] %s218
          %s220 = sshll.u32 [#allocation5], 4
          %s221 = int_to_ptr.vmem [resolvable:$true] %s220
          %226 = dma.hbm_to_vmem [thread:$0]  %s219, 8192, %s221, [#allocation6], 64, 64, 4
        $region16: #{tpu_custom_call.1} parent=11 // pred_fallthru
          _
        // Predicated region
        $region17: #{tpu_custom_call.1} parent=11 // pred_check
          %p227 = pneg %p88
        $region18: #{tpu_custom_call.1} parent=11 // pred_check_branch
          %229 = sbr.rel (%p227) target = $region20
        $region19: #{tpu_custom_call.1} parent=11 // pred_region
          _
        $region20: #{tpu_custom_call.1} parent=11 // pred_fallthru
          _
        // Predicated region
        $region21: #{tpu_custom_call.1} parent=11 // pred_check
          %p230 = pneg %p109
        $region22: #{tpu_custom_call.1} parent=11 // pred_check_branch
          %232 = sbr.rel (%p230) target = $region24
        $region23: #{tpu_custom_call.1} parent=11 // pred_region
          _
        $region24: #{tpu_custom_call.1} parent=11 // pred_fallthru
          _
        // Predicated region
        $region25: #{tpu_custom_call.1} parent=11 // pred_check
          %p233 = pneg %p130
        $region26: #{tpu_custom_call.1} parent=11 // pred_check_branch
          %235 = sbr.rel (%p233) target = $region28
        $region27: #{tpu_custom_call.1} parent=11 // pred_region
          _
        $region28: #{tpu_custom_call.1} parent=11 // pred_fallthru
          _
        // Predicated region
        $region29: #{tpu_custom_call.1} parent=11 // pred_check
          %p236 = pneg %p151
        $region30: #{tpu_custom_call.1} parent=11 // pred_check_branch
          %238 = sbr.rel (%p236) target = $region32
        $region31: #{tpu_custom_call.1} parent=11 // pred_region
          _
        $region32: #{tpu_custom_call.1} parent=11 // pred_fallthru
          _
        // Predicated region
        $region33: #{tpu_custom_call.1} parent=11 // pred_check
          %p239 = pneg %p172
        $region34: #{tpu_custom_call.1} parent=11 // pred_check_branch
          %241 = sbr.rel (%p239) target = $region36
        $region35: #{tpu_custom_call.1} parent=11 // pred_region
          _
        $region36: #{tpu_custom_call.1} parent=11 // pred_fallthru
          _
      $region12: #{tpu_custom_call.1} parent=5 // pred_fallthru
        _
      %p242 = scmp.lt.s32.totalorder %s20, 2
      // Predicated region
      $region37: #{tpu_custom_call.1} parent=5 // pred_check
        %p243 = pneg %p242
      $region38: #{tpu_custom_call.1} parent=5 // pred_check_branch
        %245 = sbr.rel (%p243) target = $region40
      $region39: #{tpu_custom_call.1} parent=5 // pred_region
        // Predicated region
        $region41: #{tpu_custom_call.1} parent=39 // pred_check
          %p246 = pneg %p40
        $region42: #{tpu_custom_call.1} parent=39 // pred_check_branch
          %248 = sbr.rel (%p246) target = $region44
        $region43: #{tpu_custom_call.1} parent=39 // pred_region
          %s249 = sand.u32 %s30, 1
          %s250 = scalar_lea.sflag [#allocation3], %s249
          %s251 = sand.u32 %s30, 1
          %s252 = smul.addr %s251, 64
          %s253 = scalar_lea.vmem [#allocation2], %s252
          %s254 = smul.u32 2, %s20
          %256 = vsyncadd %s250, 0
          %s257 = smul.addr %s254, 8
          %s258 = smul.addr %s257, 4
          %s259 = scalar_lea.hbm %s0, %s258
          %s260 = sshll.u32 %s259, 4
          %s261 = int_to_ptr.hbm [resolvable:$true] %s260
          %s262 = sshll.u32 %s253, 4
          %s263 = int_to_ptr.vmem [resolvable:$true] %s262
          %268 = dma.hbm_to_vmem [thread:$0]  %s261, 1024, %s263, %s250, 512, 512, 32
        $region44: #{tpu_custom_call.1} parent=39 // pred_fallthru
          _
      $region40: #{tpu_custom_call.1} parent=5 // pred_fallthru
        _
      %p269 = scmp.le.s32.totalorder 1, %s20
      %p270 = scmp.lt.s32.totalorder %s20, 3
      %p271 = pnand %p269, %p270
      %p272 = pneg %p271
      // Predicated region
      $region45: #{tpu_custom_call.1} parent=5 // pred_check
        _
      $region46: #{tpu_custom_call.1} parent=5 // pred_check_branch
        %274 = sbr.rel (%p271) target = $region48
      $region47: #{tpu_custom_call.1} parent=5 // pred_region
        %s275 = ssub.s32 %s20, 1
        %s276 = sand.u32 %s33, 1
        %s277 = scalar_lea.sflag [#allocation3], %s276
        %s278 = sand.u32 %s33, 1
        %s279 = smul.addr %s278, 64
        %s280 = scalar_lea.vmem [#allocation2], %s279
        // Predicated region
        $region49: #{tpu_custom_call.1} parent=47 // pred_check
          %p281 = pneg %p46
        $region50: #{tpu_custom_call.1} parent=47 // pred_check_branch
          %283 = sbr.rel (%p281) target = $region52
        $region51: #{tpu_custom_call.1} parent=47 // pred_region
          %285 = dma.done %s277, 1024
        $region52: #{tpu_custom_call.1} parent=47 // pred_fallthru
          _
        // Predicated region
        $region53: #{tpu_custom_call.1} parent=47 // pred_check
          %p286 = pneg %p67
        $region54: #{tpu_custom_call.1} parent=47 // pred_check_branch
          %288 = sbr.rel (%p286) target = $region56
        $region55: #{tpu_custom_call.1} parent=47 // pred_region
          %290 = dma.done [#allocation6], 8192
        $region56: #{tpu_custom_call.1} parent=47 // pred_fallthru
          _
        %s291 = sand.u32 %s33, 1
        %s292 = scalar_lea.sflag [#allocation3], %s291
        %s293 = sand.u32 %s33, 1
        %s294 = smul.addr %s293, 64
        %s295 = scalar_lea.vmem [#allocation2], %s294
        %p296 = pneg %p46
        %p297 = pneg %p43
        %p298 = pneg %p67
        %p299 = pneg %p64
        %p300 = pneg %p88
        %p301 = pneg %p85
        %p302 = pneg %p109
        %p303 = pneg %p106
        %p304 = pneg %p130
        %p305 = pneg %p127
        %p306 = pneg %p151
        %p307 = pneg %p148
        %p308 = pneg %p172
        %p309 = pneg %p169
        %p310 = pneg %p198
        %p311 = pneg %p195
        %s312 = sand.u32 %s185, 1
        %s313 = scalar_lea.sflag [#allocation4], %s312
        %s314 = sand.u32 %s185, 1
        %s315 = smul.addr %s314, 16
        %s316 = scalar_lea.vmem [#allocation7], %s315
        %s317 = smul.u32 2, %s25
        %s318 = smul.u32 2, %s25
        %v320 = vld [vmem:[%s280] sm:$0xff]
        %v321 = vld [vmem:[%s280 + $0x8] sm:$0xff]
        %v322 = vld [vmem:[%s280 + $0x10] sm:$0xff]
        %v323 = vld [vmem:[%s280 + $0x18] sm:$0xff]
        %v324 = vld [vmem:[%s280 + $0x20] sm:$0xff]
        %v325 = vld [vmem:[%s280 + $0x28] sm:$0xff]
        %v326 = vld [vmem:[%s280 + $0x30] sm:$0xff]
        %v327 = vld [vmem:[%s280 + $0x38] sm:$0xff]
        %v328 = vld [vmem:[#allocation5] sm:$0xf]
        %v329 = vld [vmem:[#allocation5 + $0x4] sm:$0xf]
        %v330 = vld [vmem:[#allocation5 + $0x8] sm:$0xf]
        %v331 = vld [vmem:[#allocation5 + $0xc] sm:$0xf]
        %v332 = vld [vmem:[#allocation5 + $0x10] sm:$0xf]
        %v333 = vld [vmem:[#allocation5 + $0x14] sm:$0xf]
        %v334 = vld [vmem:[#allocation5 + $0x18] sm:$0xf]
        %v335 = vld [vmem:[#allocation5 + $0x1c] sm:$0xf]
        %v336 = vld [vmem:[#allocation5 + $0x20] sm:$0xf]
        %v337 = vld [vmem:[#allocation5 + $0x24] sm:$0xf]
        %v338 = vld [vmem:[#allocation5 + $0x28] sm:$0xf]
        %v339 = vld [vmem:[#allocation5 + $0x2c] sm:$0xf]
        %v340 = vld [vmem:[#allocation5 + $0x30] sm:$0xf]
        %v341 = vld [vmem:[#allocation5 + $0x34] sm:$0xf]
        %v342 = vld [vmem:[#allocation5 + $0x38] sm:$0xf]
        %v343 = vld [vmem:[#allocation5 + $0x3c] sm:$0xf]
        %v344 = vld [vmem:[#allocation5 + $0x40] sm:$0xf]
        %v345 = vld [vmem:[#allocation5 + $0x44] sm:$0xf]
        %v346 = vld [vmem:[#allocation5 + $0x48] sm:$0xf]
        %v347 = vld [vmem:[#allocation5 + $0x4c] sm:$0xf]
        %v348 = vld [vmem:[#allocation5 + $0x50] sm:$0xf]
        %v349 = vld [vmem:[#allocation5 + $0x54] sm:$0xf]
        %v350 = vld [vmem:[#allocation5 + $0x58] sm:$0xf]
        %v351 = vld [vmem:[#allocation5 + $0x5c] sm:$0xf]
        %v352 = vld [vmem:[#allocation5 + $0x60] sm:$0xf]
        %v353 = vld [vmem:[#allocation5 + $0x64] sm:$0xf]
        %v354 = vld [vmem:[#allocation5 + $0x68] sm:$0xf]
        %v355 = vld [vmem:[#allocation5 + $0x6c] sm:$0xf]
        %v356 = vld [vmem:[#allocation5 + $0x70] sm:$0xf]
        %v357 = vld [vmem:[#allocation5 + $0x74] sm:$0xf]
        %v358 = vld [vmem:[#allocation5 + $0x78] sm:$0xf]
        %v359 = vld [vmem:[#allocation5 + $0x7c] sm:$0xf]
        %v360 = vld [vmem:[#allocation5 + $0x80] sm:$0xf]
        %v361 = vld [vmem:[#allocation5 + $0x84] sm:$0xf]
        %v362 = vld [vmem:[#allocation5 + $0x88] sm:$0xf]
        %v363 = vld [vmem:[#allocation5 + $0x8c] sm:$0xf]
        %v364 = vld [vmem:[#allocation5 + $0x90] sm:$0xf]
        %v365 = vld [vmem:[#allocation5 + $0x94] sm:$0xf]
        %v366 = vld [vmem:[#allocation5 + $0x98] sm:$0xf]
        %v367 = vld [vmem:[#allocation5 + $0x9c] sm:$0xf]
        %v368 = vld [vmem:[#allocation5 + $0xa0] sm:$0xf]
        %v369 = vld [vmem:[#allocation5 + $0xa4] sm:$0xf]
        %v370 = vld [vmem:[#allocation5 + $0xa8] sm:$0xf]
        %v371 = vld [vmem:[#allocation5 + $0xac] sm:$0xf]
        %v372 = vld [vmem:[#allocation5 + $0xb0] sm:$0xf]
        %v373 = vld [vmem:[#allocation5 + $0xb4] sm:$0xf]
        %v374 = vld [vmem:[#allocation5 + $0xb8] sm:$0xf]
        %v375 = vld [vmem:[#allocation5 + $0xbc] sm:$0xf]
        %v376 = vld [vmem:[#allocation5 + $0xc0] sm:$0xf]
        %v377 = vld [vmem:[#allocation5 + $0xc4] sm:$0xf]
        %v378 = vld [vmem:[#allocation5 + $0xc8] sm:$0xf]
        %v379 = vld [vmem:[#allocation5 + $0xcc] sm:$0xf]
        %v380 = vld [vmem:[#allocation5 + $0xd0] sm:$0xf]
        %v381 = vld [vmem:[#allocation5 + $0xd4] sm:$0xf]
        %v382 = vld [vmem:[#allocation5 + $0xd8] sm:$0xf]
        %v383 = vld [vmem:[#allocation5 + $0xdc] sm:$0xf]
        %v384 = vld [vmem:[#allocation5 + $0xe0] sm:$0xf]
        %v385 = vld [vmem:[#allocation5 + $0xe4] sm:$0xf]
        %v386 = vld [vmem:[#allocation5 + $0xe8] sm:$0xf]
        %v387 = vld [vmem:[#allocation5 + $0xec] sm:$0xf]
        %v388 = vld [vmem:[#allocation5 + $0xf0] sm:$0xf]
        %v389 = vld [vmem:[#allocation5 + $0xf4] sm:$0xf]
        %v390 = vld [vmem:[#allocation5 + $0xf8] sm:$0xf]
        %v391 = vld [vmem:[#allocation5 + $0xfc] sm:$0xf]
        %v392 = vld [vmem:[#allocation5 + $0x100] sm:$0xf]
        %v393 = vld [vmem:[#allocation5 + $0x104] sm:$0xf]
        %v394 = vld [vmem:[#allocation5 + $0x108] sm:$0xf]
        %v395 = vld [vmem:[#allocation5 + $0x10c] sm:$0xf]
        %v396 = vld [vmem:[#allocation5 + $0x110] sm:$0xf]
        %v397 = vld [vmem:[#allocation5 + $0x114] sm:$0xf]
        %v398 = vld [vmem:[#allocation5 + $0x118] sm:$0xf]
        %v399 = vld [vmem:[#allocation5 + $0x11c] sm:$0xf]
        %v400 = vld [vmem:[#allocation5 + $0x120] sm:$0xf]
        %v401 = vld [vmem:[#allocation5 + $0x124] sm:$0xf]
        %v402 = vld [vmem:[#allocation5 + $0x128] sm:$0xf]
        %v403 = vld [vmem:[#allocation5 + $0x12c] sm:$0xf]
        %v404 = vld [vmem:[#allocation5 + $0x130] sm:$0xf]
        %v405 = vld [vmem:[#allocation5 + $0x134] sm:$0xf]
        %v406 = vld [vmem:[#allocation5 + $0x138] sm:$0xf]
        %v407 = vld [vmem:[#allocation5 + $0x13c] sm:$0xf]
        %v408 = vld [vmem:[#allocation5 + $0x140] sm:$0xf]
        %v409 = vld [vmem:[#allocation5 + $0x144] sm:$0xf]
        %v410 = vld [vmem:[#allocation5 + $0x148] sm:$0xf]
        %v411 = vld [vmem:[#allocation5 + $0x14c] sm:$0xf]
        %v412 = vld [vmem:[#allocation5 + $0x150] sm:$0xf]
        %v413 = vld [vmem:[#allocation5 + $0x154] sm:$0xf]
        %v414 = vld [vmem:[#allocation5 + $0x158] sm:$0xf]
        %v415 = vld [vmem:[#allocation5 + $0x15c] sm:$0xf]
        %v416 = vld [vmem:[#allocation5 + $0x160] sm:$0xf]
        %v417 = vld [vmem:[#allocation5 + $0x164] sm:$0xf]
        %v418 = vld [vmem:[#allocation5 + $0x168] sm:$0xf]
        %v419 = vld [vmem:[#allocation5 + $0x16c] sm:$0xf]
        %v420 = vld [vmem:[#allocation5 + $0x170] sm:$0xf]
        %v421 = vld [vmem:[#allocation5 + $0x174] sm:$0xf]
        %v422 = vld [vmem:[#allocation5 + $0x178] sm:$0xf]
        %v423 = vld [vmem:[#allocation5 + $0x17c] sm:$0xf]
        %v424 = vld [vmem:[#allocation5 + $0x180] sm:$0xf]
        %v425 = vld [vmem:[#allocation5 + $0x184] sm:$0xf]
        %v426 = vld [vmem:[#allocation5 + $0x188] sm:$0xf]
        %v427 = vld [vmem:[#allocation5 + $0x18c] sm:$0xf]
        %v428 = vld [vmem:[#allocation5 + $0x190] sm:$0xf]
        %v429 = vld [vmem:[#allocation5 + $0x194] sm:$0xf]
        %v430 = vld [vmem:[#allocation5 + $0x198] sm:$0xf]
        %v431 = vld [vmem:[#allocation5 + $0x19c] sm:$0xf]
        %v432 = vld [vmem:[#allocation5 + $0x1a0] sm:$0xf]
        %v433 = vld [vmem:[#allocation5 + $0x1a4] sm:$0xf]
        %v434 = vld [vmem:[#allocation5 + $0x1a8] sm:$0xf]
        %v435 = vld [vmem:[#allocation5 + $0x1ac] sm:$0xf]
        %v436 = vld [vmem:[#allocation5 + $0x1b0] sm:$0xf]
        %v437 = vld [vmem:[#allocation5 + $0x1b4] sm:$0xf]
        %v438 = vld [vmem:[#allocation5 + $0x1b8] sm:$0xf]
        %v439 = vld [vmem:[#allocation5 + $0x1bc] sm:$0xf]
        %v440 = vld [vmem:[#allocation5 + $0x1c0] sm:$0xf]
        %v441 = vld [vmem:[#allocation5 + $0x1c4] sm:$0xf]
        %v442 = vld [vmem:[#allocation5 + $0x1c8] sm:$0xf]
        %v443 = vld [vmem:[#allocation5 + $0x1cc] sm:$0xf]
        %v444 = vld [vmem:[#allocation5 + $0x1d0] sm:$0xf]
        %v445 = vld [vmem:[#allocation5 + $0x1d4] sm:$0xf]
        %v446 = vld [vmem:[#allocation5 + $0x1d8] sm:$0xf]
        %v447 = vld [vmem:[#allocation5 + $0x1dc] sm:$0xf]
        %v448 = vld [vmem:[#allocation5 + $0x1e0] sm:$0xf]
        %v449 = vld [vmem:[#allocation5 + $0x1e4] sm:$0xf]
        %v450 = vld [vmem:[#allocation5 + $0x1e8] sm:$0xf]
        %v451 = vld [vmem:[#allocation5 + $0x1ec] sm:$0xf]
        %v452 = vld [vmem:[#allocation5 + $0x1f0] sm:$0xf]
        %v453 = vld [vmem:[#allocation5 + $0x1f4] sm:$0xf]
        %v454 = vld [vmem:[#allocation5 + $0x1f8] sm:$0xf]
        %v455 = vld [vmem:[#allocation5 + $0x1fc] sm:$0xf]
        %v456 = vld [vmem:[%s2] sm:$0x1]
        %v458 = vperm.slane %v456, 0
        %v468 = vunpack.c.l.b16 %v320
        %v469 = vunpack.c.h.b16 %v320
        %v470 = vunpack.c.l.b16 %v321
        %v471 = vunpack.c.h.b16 %v321
        %v472 = vunpack.c.l.b16 %v322
        %v473 = vunpack.c.h.b16 %v322
        %v474 = vunpack.c.l.b16 %v323
        %v475 = vunpack.c.h.b16 %v323
        %v476 = vunpack.c.l.b16 %v324
        %v477 = vunpack.c.h.b16 %v324
        %v478 = vunpack.c.l.b16 %v325
        %v479 = vunpack.c.h.b16 %v325
        %v480 = vunpack.c.l.b16 %v326
        %v481 = vunpack.c.h.b16 %v326
        %v482 = vunpack.c.l.b16 %v327
        %v483 = vunpack.c.h.b16 %v327
        %v484 = vpack.c.b16 %v476, %v468
        %v485 = vpack.c.b16 %v477, %v469
        %v486 = vpack.c.b16 %v478, %v470
        %v487 = vpack.c.b16 %v479, %v471
        %v488 = vpack.c.b16 %v480, %v472
        %v489 = vpack.c.b16 %v481, %v473
        %v490 = vpack.c.b16 %v482, %v474
        %v491 = vpack.c.b16 %v483, %v475
        %v628 = vunpack.c.l.b16 %v328
        %v629 = vunpack.c.l.b16 %v329
        %v630 = vunpack.c.l.b16 %v330
        %v631 = vunpack.c.l.b16 %v331
        %v632 = vunpack.c.l.b16 %v332
        %v633 = vunpack.c.l.b16 %v333
        %v634 = vunpack.c.l.b16 %v334
        %v635 = vunpack.c.l.b16 %v335
        %v636 = vunpack.c.l.b16 %v336
        %v637 = vunpack.c.l.b16 %v337
        %v638 = vunpack.c.l.b16 %v338
        %v639 = vunpack.c.l.b16 %v339
        %v640 = vunpack.c.l.b16 %v340
        %v641 = vunpack.c.l.b16 %v341
        %v642 = vunpack.c.l.b16 %v342
        %v643 = vunpack.c.l.b16 %v343
        %v644 = vunpack.c.l.b16 %v344
        %v645 = vunpack.c.l.b16 %v345
        %v646 = vunpack.c.l.b16 %v346
        %v647 = vunpack.c.l.b16 %v347
        %v648 = vunpack.c.l.b16 %v348
        %v649 = vunpack.c.l.b16 %v349
        %v650 = vunpack.c.l.b16 %v350
        %v651 = vunpack.c.l.b16 %v351
        %v652 = vunpack.c.l.b16 %v352
        %v653 = vunpack.c.l.b16 %v353
        %v654 = vunpack.c.l.b16 %v354
        %v655 = vunpack.c.l.b16 %v355
        %v656 = vunpack.c.l.b16 %v356
        %v657 = vunpack.c.l.b16 %v357
        %v658 = vunpack.c.l.b16 %v358
        %v659 = vunpack.c.l.b16 %v359
        %v660 = vunpack.c.l.b16 %v360
        %v661 = vunpack.c.l.b16 %v361
        %v662 = vunpack.c.l.b16 %v362
        %v663 = vunpack.c.l.b16 %v363
        %v664 = vunpack.c.l.b16 %v364
        %v665 = vunpack.c.l.b16 %v365
        %v666 = vunpack.c.l.b16 %v366
        %v667 = vunpack.c.l.b16 %v367
        %v668 = vunpack.c.l.b16 %v368
        %v669 = vunpack.c.l.b16 %v369
        %v670 = vunpack.c.l.b16 %v370
        %v671 = vunpack.c.l.b16 %v371
        %v672 = vunpack.c.l.b16 %v372
        %v673 = vunpack.c.l.b16 %v373
        %v674 = vunpack.c.l.b16 %v374
        %v675 = vunpack.c.l.b16 %v375
        %v676 = vunpack.c.l.b16 %v376
        %v677 = vunpack.c.l.b16 %v377
        %v678 = vunpack.c.l.b16 %v378
        %v679 = vunpack.c.l.b16 %v379
        %v680 = vunpack.c.l.b16 %v380
        %v681 = vunpack.c.l.b16 %v381
        %v682 = vunpack.c.l.b16 %v382
        %v683 = vunpack.c.l.b16 %v383
        %v684 = vunpack.c.l.b16 %v384
        %v685 = vunpack.c.l.b16 %v385
        %v686 = vunpack.c.l.b16 %v386
        %v687 = vunpack.c.l.b16 %v387
        %v688 = vunpack.c.l.b16 %v388
        %v689 = vunpack.c.l.b16 %v389
        %v690 = vunpack.c.l.b16 %v390
        %v691 = vunpack.c.l.b16 %v391
        %v692 = vunpack.c.l.b16 %v392
        %v693 = vunpack.c.l.b16 %v393
        %v694 = vunpack.c.l.b16 %v394
        %v695 = vunpack.c.l.b16 %v395
        %v696 = vunpack.c.l.b16 %v396
        %v697 = vunpack.c.l.b16 %v397
        %v698 = vunpack.c.l.b16 %v398
        %v699 = vunpack.c.l.b16 %v399
        %v700 = vunpack.c.l.b16 %v400
        %v701 = vunpack.c.l.b16 %v401
        %v702 = vunpack.c.l.b16 %v402
        %v703 = vunpack.c.l.b16 %v403
        %v704 = vunpack.c.l.b16 %v404
        %v705 = vunpack.c.l.b16 %v405
        %v706 = vunpack.c.l.b16 %v406
        %v707 = vunpack.c.l.b16 %v407
        %v708 = vunpack.c.l.b16 %v408
        %v709 = vunpack.c.l.b16 %v409
        %v710 = vunpack.c.l.b16 %v410
        %v711 = vunpack.c.l.b16 %v411
        %v712 = vunpack.c.l.b16 %v412
        %v713 = vunpack.c.l.b16 %v413
        %v714 = vunpack.c.l.b16 %v414
        %v715 = vunpack.c.l.b16 %v415
        %v716 = vunpack.c.l.b16 %v416
        %v717 = vunpack.c.l.b16 %v417
        %v718 = vunpack.c.l.b16 %v418
        %v719 = vunpack.c.l.b16 %v419
        %v720 = vunpack.c.l.b16 %v420
        %v721 = vunpack.c.l.b16 %v421
        %v722 = vunpack.c.l.b16 %v422
        %v723 = vunpack.c.l.b16 %v423
        %v724 = vunpack.c.l.b16 %v424
        %v725 = vunpack.c.l.b16 %v425
        %v726 = vunpack.c.l.b16 %v426
        %v727 = vunpack.c.l.b16 %v427
        %v728 = vunpack.c.l.b16 %v428
        %v729 = vunpack.c.l.b16 %v429
        %v730 = vunpack.c.l.b16 %v430
        %v731 = vunpack.c.l.b16 %v431
        %v732 = vunpack.c.l.b16 %v432
        %v733 = vunpack.c.l.b16 %v433
        %v734 = vunpack.c.l.b16 %v434
        %v735 = vunpack.c.l.b16 %v435
        %v736 = vunpack.c.l.b16 %v436
        %v737 = vunpack.c.l.b16 %v437
        %v738 = vunpack.c.l.b16 %v438
        %v739 = vunpack.c.l.b16 %v439
        %v740 = vunpack.c.l.b16 %v440
        %v741 = vunpack.c.l.b16 %v441
        %v742 = vunpack.c.l.b16 %v442
        %v743 = vunpack.c.l.b16 %v443
        %v744 = vunpack.c.l.b16 %v444
        %v745 = vunpack.c.l.b16 %v445
        %v746 = vunpack.c.l.b16 %v446
        %v747 = vunpack.c.l.b16 %v447
        %v748 = vunpack.c.l.b16 %v448
        %v749 = vunpack.c.l.b16 %v449
        %v750 = vunpack.c.l.b16 %v450
        %v751 = vunpack.c.l.b16 %v451
        %v752 = vunpack.c.l.b16 %v452
        %v753 = vunpack.c.l.b16 %v453
        %v754 = vunpack.c.l.b16 %v454
        %v755 = vunpack.c.l.b16 %v455
        %v756 = vpack.c.b16 %v629, %v628
        %v757 = vpack.c.b16 %v631, %v630
        %v758 = vpack.c.b16 %v633, %v632
        %v759 = vpack.c.b16 %v635, %v634
        %v760 = vpack.c.b16 %v637, %v636
        %v761 = vpack.c.b16 %v639, %v638
        %v762 = vpack.c.b16 %v641, %v640
        %v763 = vpack.c.b16 %v643, %v642
        %v764 = vpack.c.b16 %v645, %v644
        %v765 = vpack.c.b16 %v647, %v646
        %v766 = vpack.c.b16 %v649, %v648
        %v767 = vpack.c.b16 %v651, %v650
        %v768 = vpack.c.b16 %v653, %v652
        %v769 = vpack.c.b16 %v655, %v654
        %v770 = vpack.c.b16 %v657, %v656
        %v771 = vpack.c.b16 %v659, %v658
        %v772 = vpack.c.b16 %v661, %v660
        %v773 = vpack.c.b16 %v663, %v662
        %v774 = vpack.c.b16 %v665, %v664
        %v775 = vpack.c.b16 %v667, %v666
        %v776 = vpack.c.b16 %v669, %v668
        %v777 = vpack.c.b16 %v671, %v670
        %v778 = vpack.c.b16 %v673, %v672
        %v779 = vpack.c.b16 %v675, %v674
        %v780 = vpack.c.b16 %v677, %v676
        %v781 = vpack.c.b16 %v679, %v678
        %v782 = vpack.c.b16 %v681, %v680
        %v783 = vpack.c.b16 %v683, %v682
        %v784 = vpack.c.b16 %v685, %v684
        %v785 = vpack.c.b16 %v687, %v686
        %v786 = vpack.c.b16 %v689, %v688
        %v787 = vpack.c.b16 %v691, %v690
        %v788 = vpack.c.b16 %v693, %v692
        %v789 = vpack.c.b16 %v695, %v694
        %v790 = vpack.c.b16 %v697, %v696
        %v791 = vpack.c.b16 %v699, %v698
        %v792 = vpack.c.b16 %v701, %v700
        %v793 = vpack.c.b16 %v703, %v702
        %v794 = vpack.c.b16 %v705, %v704
        %v795 = vpack.c.b16 %v707, %v706
        %v796 = vpack.c.b16 %v709, %v708
        %v797 = vpack.c.b16 %v711, %v710
        %v798 = vpack.c.b16 %v713, %v712
        %v799 = vpack.c.b16 %v715, %v714
        %v800 = vpack.c.b16 %v717, %v716
        %v801 = vpack.c.b16 %v719, %v718
        %v802 = vpack.c.b16 %v721, %v720
        %v803 = vpack.c.b16 %v723, %v722
        %v804 = vpack.c.b16 %v725, %v724
        %v805 = vpack.c.b16 %v727, %v726
        %v806 = vpack.c.b16 %v729, %v728
        %v807 = vpack.c.b16 %v731, %v730
        %v808 = vpack.c.b16 %v733, %v732
        %v809 = vpack.c.b16 %v735, %v734
        %v810 = vpack.c.b16 %v737, %v736
        %v811 = vpack.c.b16 %v739, %v738
        %v812 = vpack.c.b16 %v741, %v740
        %v813 = vpack.c.b16 %v743, %v742
        %v814 = vpack.c.b16 %v745, %v744
        %v815 = vpack.c.b16 %v747, %v746
        %v816 = vpack.c.b16 %v749, %v748
        %v817 = vpack.c.b16 %v751, %v750
        %v818 = vpack.c.b16 %v753, %v752
        %v819 = vpack.c.b16 %v755, %v754
        %884 = vmatpush.bf16.msra.mxu0 %v763
        %885 = vmatpush.bf16.msra.mxu0 %v762
        %886 = vmatpush.bf16.msra.mxu0 %v761
        %887 = vmatpush.bf16.msra.mxu0 %v760
        %888 = vmatpush.bf16.msra.mxu0 %v759
        %889 = vmatpush.bf16.msra.mxu0 %v758
        %890 = vmatpush.bf16.msra.mxu0 %v757
        %891 = vmatpush.bf16.msra.mxu0 %v756
        %892 = vmatmul.bf16.gmra.mxu0 %v484
        %v893 = vpop.f32.mrf.mxu0
        %v894 = vadd.f32 %v458, %v893
        %v895 = vpop.f32.mrf.mxu0
        %v896 = vadd.f32 %v458, %v895
        %897 = vdwg.mxu0
        %898 = vmatpush.bf16.msra.mxu0 %v771
        %899 = vmatpush.bf16.msra.mxu0 %v770
        %900 = vmatpush.bf16.msra.mxu0 %v769
        %901 = vmatpush.bf16.msra.mxu0 %v768
        %902 = vmatpush.bf16.msra.mxu0 %v767
        %903 = vmatpush.bf16.msra.mxu0 %v766
        %904 = vmatpush.bf16.msra.mxu0 %v765
        %905 = vmatpush.bf16.msra.mxu0 %v764
        %906 = vmatmul.bf16.gmra.mxu0 %v485
        %v907 = vpop.f32.mrf.mxu0
        %v908 = vadd.f32 %v894, %v907
        %v909 = vpop.f32.mrf.mxu0
        %v910 = vadd.f32 %v896, %v909
        %911 = vdwg.mxu0
        %912 = vmatpush.bf16.msra.mxu0 %v779
        %913 = vmatpush.bf16.msra.mxu0 %v778
        %914 = vmatpush.bf16.msra.mxu0 %v777
        %915 = vmatpush.bf16.msra.mxu0 %v776
        %916 = vmatpush.bf16.msra.mxu0 %v775
        %917 = vmatpush.bf16.msra.mxu0 %v774
        %918 = vmatpush.bf16.msra.mxu0 %v773
        %919 = vmatpush.bf16.msra.mxu0 %v772
        %920 = vmatmul.bf16.gmra.mxu0 %v486
        %v921 = vpop.f32.mrf.mxu0
        %v922 = vadd.f32 %v908, %v921
        %v923 = vpop.f32.mrf.mxu0
        %v924 = vadd.f32 %v910, %v923
        %925 = vdwg.mxu0
        %926 = vmatpush.bf16.msra.mxu0 %v787
        %927 = vmatpush.bf16.msra.mxu0 %v786
        %928 = vmatpush.bf16.msra.mxu0 %v785
        %929 = vmatpush.bf16.msra.mxu0 %v784
        %930 = vmatpush.bf16.msra.mxu0 %v783
        %931 = vmatpush.bf16.msra.mxu0 %v782
        %932 = vmatpush.bf16.msra.mxu0 %v781
        %933 = vmatpush.bf16.msra.mxu0 %v780
        %934 = vmatmul.bf16.gmra.mxu0 %v487
        %v935 = vpop.f32.mrf.mxu0
        %v936 = vadd.f32 %v922, %v935
        %v937 = vpop.f32.mrf.mxu0
        %v938 = vadd.f32 %v924, %v937
        %939 = vdwg.mxu0
        %940 = vmatpush.bf16.msra.mxu0 %v795
        %941 = vmatpush.bf16.msra.mxu0 %v794
        %942 = vmatpush.bf16.msra.mxu0 %v793
        %943 = vmatpush.bf16.msra.mxu0 %v792
        %944 = vmatpush.bf16.msra.mxu0 %v791
        %945 = vmatpush.bf16.msra.mxu0 %v790
        %946 = vmatpush.bf16.msra.mxu0 %v789
        %947 = vmatpush.bf16.msra.mxu0 %v788
        %948 = vmatmul.bf16.gmra.mxu0 %v488
        %v949 = vpop.f32.mrf.mxu0
        %v950 = vadd.f32 %v936, %v949
        %v951 = vpop.f32.mrf.mxu0
        %v952 = vadd.f32 %v938, %v951
        %953 = vdwg.mxu0
        %954 = vmatpush.bf16.msra.mxu0 %v803
        %955 = vmatpush.bf16.msra.mxu0 %v802
        %956 = vmatpush.bf16.msra.mxu0 %v801
        %957 = vmatpush.bf16.msra.mxu0 %v800
        %958 = vmatpush.bf16.msra.mxu0 %v799
        %959 = vmatpush.bf16.msra.mxu0 %v798
        %960 = vmatpush.bf16.msra.mxu0 %v797
        %961 = vmatpush.bf16.msra.mxu0 %v796
        %962 = vmatmul.bf16.gmra.mxu0 %v489
        %v963 = vpop.f32.mrf.mxu0
        %v964 = vadd.f32 %v950, %v963
        %v965 = vpop.f32.mrf.mxu0
        %v966 = vadd.f32 %v952, %v965
        %967 = vdwg.mxu0
        %968 = vmatpush.bf16.msra.mxu0 %v811
        %969 = vmatpush.bf16.msra.mxu0 %v810
        %970 = vmatpush.bf16.msra.mxu0 %v809
        %971 = vmatpush.bf16.msra.mxu0 %v808
        %972 = vmatpush.bf16.msra.mxu0 %v807
        %973 = vmatpush.bf16.msra.mxu0 %v806
        %974 = vmatpush.bf16.msra.mxu0 %v805
        %975 = vmatpush.bf16.msra.mxu0 %v804
        %976 = vmatmul.bf16.gmra.mxu0 %v490
        %v977 = vpop.f32.mrf.mxu0
        %v978 = vadd.f32 %v964, %v977
        %v979 = vpop.f32.mrf.mxu0
        %v980 = vadd.f32 %v966, %v979
        %981 = vdwg.mxu0
        %982 = vmatpush.bf16.msra.mxu0 %v819
        %983 = vmatpush.bf16.msra.mxu0 %v818
        %984 = vmatpush.bf16.msra.mxu0 %v817
        %985 = vmatpush.bf16.msra.mxu0 %v816
        %986 = vmatpush.bf16.msra.mxu0 %v815
        %987 = vmatpush.bf16.msra.mxu0 %v814
        %988 = vmatpush.bf16.msra.mxu0 %v813
        %989 = vmatpush.bf16.msra.mxu0 %v812
        %990 = vmatmul.bf16.gmra.mxu0 %v491
        %v991 = vpop.f32.mrf.mxu0
        %v992 = vadd.f32 %v978, %v991
        %v993 = vpop.f32.mrf.mxu0
        %v994 = vadd.f32 %v980, %v993
        %995 = vdwg.mxu0
        %v996 = vmax.f32 %v992, 0.0
        %v997 = vmax.f32 %v994, 0.0
        %v998 = vpack.c.bf16 %v997, %v996
        %v999 = vld [vmem:[%s3] sm:$0xf]
        %v1000 = vld [vmem:[%s3 + $0x4] sm:$0xf]
        %v1001 = vld [vmem:[%s3 + $0x8] sm:$0xf]
        %v1002 = vld [vmem:[%s3 + $0xc] sm:$0xf]
        %v1003 = vld [vmem:[%s3 + $0x10] sm:$0xf]
        %v1004 = vld [vmem:[%s3 + $0x14] sm:$0xf]
        %v1005 = vld [vmem:[%s3 + $0x18] sm:$0xf]
        %v1006 = vld [vmem:[%s3 + $0x1c] sm:$0xf]
        %v1007 = vld [vmem:[%s3 + $0x20] sm:$0xf]
        %v1008 = vld [vmem:[%s3 + $0x24] sm:$0xf]
        %v1009 = vld [vmem:[%s3 + $0x28] sm:$0xf]
        %v1010 = vld [vmem:[%s3 + $0x2c] sm:$0xf]
        %v1011 = vld [vmem:[%s3 + $0x30] sm:$0xf]
        %v1012 = vld [vmem:[%s3 + $0x34] sm:$0xf]
        %v1013 = vld [vmem:[%s3 + $0x38] sm:$0xf]
        %v1014 = vld [vmem:[%s3 + $0x3c] sm:$0xf]
        %v1015 = vld [vmem:[%s4] sm:$0x1]
        %v1017 = vperm.slane %v1015, 0
        %v1035 = vunpack.c.l.b16 %v999
        %v1036 = vunpack.c.l.b16 %v1000
        %v1037 = vunpack.c.l.b16 %v1001
        %v1038 = vunpack.c.l.b16 %v1002
        %v1039 = vunpack.c.l.b16 %v1003
        %v1040 = vunpack.c.l.b16 %v1004
        %v1041 = vunpack.c.l.b16 %v1005
        %v1042 = vunpack.c.l.b16 %v1006
        %v1043 = vunpack.c.l.b16 %v1007
        %v1044 = vunpack.c.l.b16 %v1008
        %v1045 = vunpack.c.l.b16 %v1009
        %v1046 = vunpack.c.l.b16 %v1010
        %v1047 = vunpack.c.l.b16 %v1011
        %v1048 = vunpack.c.l.b16 %v1012
        %v1049 = vunpack.c.l.b16 %v1013
        %v1050 = vunpack.c.l.b16 %v1014
        %v1051 = vpack.c.b16 %v1036, %v1035
        %v1052 = vpack.c.b16 %v1038, %v1037
        %v1053 = vpack.c.b16 %v1040, %v1039
        %v1054 = vpack.c.b16 %v1042, %v1041
        %v1055 = vpack.c.b16 %v1044, %v1043
        %v1056 = vpack.c.b16 %v1046, %v1045
        %v1057 = vpack.c.b16 %v1048, %v1047
        %v1058 = vpack.c.b16 %v1050, %v1049
        %1067 = vmatpush.bf16.msra.mxu0 %v1058
        %1068 = vmatpush.bf16.msra.mxu0 %v1057
        %1069 = vmatpush.bf16.msra.mxu0 %v1056
        %1070 = vmatpush.bf16.msra.mxu0 %v1055
        %1071 = vmatpush.bf16.msra.mxu0 %v1054
        %1072 = vmatpush.bf16.msra.mxu0 %v1053
        %1073 = vmatpush.bf16.msra.mxu0 %v1052
        %1074 = vmatpush.bf16.msra.mxu0 %v1051
        %1075 = vmatmul.bf16.gmra.mxu0 %v998
        %v1076 = vpop.f32.mrf.mxu0
        %v1077 = vadd.f32 %v1017, %v1076
        %v1078 = vpop.f32.mrf.mxu0
        %v1079 = vadd.f32 %v1017, %v1078
        %1080 = vdwg.mxu0
        %v1081 = vmax.f32 %v1077, 0.0
        %v1082 = vmax.f32 %v1079, 0.0
        %v1083 = vpack.c.bf16 %v1082, %v1081
        %v1084 = vld [vmem:[%s5] sm:$0xf]
        %v1085 = vld [vmem:[%s5 + $0x4] sm:$0xf]
        %v1086 = vld [vmem:[%s5 + $0x8] sm:$0xf]
        %v1087 = vld [vmem:[%s5 + $0xc] sm:$0xf]
        %v1088 = vld [vmem:[%s6] sm:$0x1]
        %v1090 = vperm.slane %v1088, 0
        %v1096 = vunpack.c.l.b16 %v1084
        %v1097 = vunpack.c.l.b16 %v1085
        %v1098 = vunpack.c.l.b16 %v1086
        %v1099 = vunpack.c.l.b16 %v1087
        %v1100 = vpack.c.b16 %v1097, %v1096
        %v1101 = vpack.c.b16 %v1099, %v1098
        %vm1104 = vcmask 261120
        %v1106 = vsel %vm1104, %v1083, 0
        %1108 = vmatpush.bf16.msra.mxu0 0
        %1109 = vmatpush.bf16.msra.mxu0 0
        %1110 = vmatpush.bf16.msra.mxu0 0
        %1111 = vmatpush.bf16.msra.mxu0 0
        %1112 = vmatpush.bf16.msra.mxu0 0
        %1113 = vmatpush.bf16.msra.mxu0 0
        %1114 = vmatpush.bf16.msra.mxu0 %v1101
        %1115 = vmatpush.bf16.msra.mxu0 %v1100
        %1116 = vmatmul.bf16.gmra.mxu0 %v1106
        %v1117 = vpop.f32.mrf.mxu0
        %v1118 = vadd.f32 %v1090, %v1117
        %v1119 = vpop.f32.mrf.mxu0
        %v1120 = vadd.f32 %v1090, %v1119
        %1121 = vdwg.mxu0
        %1122 = vst [vmem:[%s316] sm:$0xff] %v1118
        %1123 = vst [vmem:[%s316 + $0x8] sm:$0xff] %v1120
        %s1124 = sand.u32 %s185, 1
        %s1125 = scalar_lea.sflag [#allocation4], %s1124
        %s1126 = sand.u32 %s185, 1
        %s1127 = smul.addr %s1126, 16
        %s1128 = scalar_lea.vmem [#allocation7], %s1127
        // Predicated region
        $region57: #{tpu_custom_call.1} parent=47 // pred_check
          %p1129 = pneg %p195
        $region58: #{tpu_custom_call.1} parent=47 // pred_check_branch
          %1131 = sbr.rel (%p1129) target = $region60
        $region59: #{tpu_custom_call.1} parent=47 // pred_region
          %s1132 = smul.u32 2, %s25
          %1134 = vsyncadd %s1125, 0
          %s1135 = smul.addr %s1132, 8
          %s1136 = scalar_lea.hbm %s7, %s1135
          %s1137 = sshll.u32 %s1128, 4
          %s1138 = int_to_ptr.vmem [resolvable:$true] %s1137
          %s1139 = sshll.u32 %s1136, 4
          %s1140 = int_to_ptr.hbm [resolvable:$true] %s1139
          %1145 = dma.vmem_to_hbm [thread:$0]  %s1138, 256, %s1140, %s1125, 128, 128, 8
        $region60: #{tpu_custom_call.1} parent=47 // pred_fallthru
          _
      $region48: #{tpu_custom_call.1} parent=5 // pred_fallthru
        _
      %p1146 = scmp.le.s32.totalorder 2, %s20
      // Predicated region
      $region61: #{tpu_custom_call.1} parent=5 // pred_check
        %p1147 = pneg %p1146
      $region62: #{tpu_custom_call.1} parent=5 // pred_check_branch
        %1149 = sbr.rel (%p1147) target = $region64
      $region63: #{tpu_custom_call.1} parent=5 // pred_region
        %s1150 = ssub.s32 %s20, 2
        // Predicated region
        $region65: #{tpu_custom_call.1} parent=63 // pred_check
          %p1151 = pneg %p201
        $region66: #{tpu_custom_call.1} parent=63 // pred_check_branch
          %1153 = sbr.rel (%p1151) target = $region68
        $region67: #{tpu_custom_call.1} parent=63 // pred_region
          %s1154 = sand.u32 %s186, 1
          %s1155 = scalar_lea.sflag [#allocation4], %s1154
          %s1156 = sand.u32 %s186, 1
          %s1157 = smul.addr %s1156, 16
          %s1158 = scalar_lea.vmem [#allocation7], %s1157
          %1160 = dma.done %s1155, 256
        $region68: #{tpu_custom_call.1} parent=63 // pred_fallthru
          _
      $region64: #{tpu_custom_call.1} parent=5 // pred_fallthru
        _
    $region6: #{tpu_custom_call.1} parent=1 // loop_footer
      %s24 = sadd.s32 1, %s20
    $region7: #{tpu_custom_call.1} parent=1 // loop_footer_branch
      %19 = sbr.rel target = $region3
    $region8: #{tpu_custom_call.1} parent=1 // loop_exit
      _
    %1161 = vsyncpa [#allocation3], 1
    %s1162 = scalar_lea.sflag [#allocation3], 1
    %1163 = vsyncpa %s1162, 1
    %1164 = vsyncpa [#allocation6], 1
    %1165 = vsyncpa [#allocation4], 1
    %s1166 = scalar_lea.sflag [#allocation4], 1
    %1167 = vsyncpa %s1166, 1

</llo_original>
